<compile_context>
chip_gen: v6e
topology: v6e:2x2x1
jax: 0.10.0
libtpu: 0.0.40
codegen_flags: <defaults>
</compile_context>

<pallas_src>
import math
from functools import partial

import jax
import jax.numpy as jnp
from jax.experimental import pallas as pl
from jax.experimental.pallas import tpu as pltpu


def _copy_kernel(x_ref, o_ref):
    # Identity copy of the current tile.
    o_ref[...] = x_ref[...]


_LANE = 128
_SUBLANE = 8
_MAX_LANES = 2048                        # 16 vregs wide; lane-dense, unmasked stores
_MIN_GRID_STEPS = 8                      # >= 3-4 pipeline steps per TC on v7x (2 TCs)
_MIN_STEP_BYTES = 256 * 1024             # don't split into steps smaller than this
_DEFAULT_BLOCK_BYTES = 4 * 1024 * 1024   # v5e / v6e / unknown
_V7X_BLOCK_BYTES = 8 * 1024 * 1024       # v7x: 3.2 TB/s HBM amortizes per-step overhead

_cached_block_bytes = None


def _target_block_bytes() -> int:
    """Generation-aware block-size target (trace-time hardware query, cached)."""
    global _cached_block_bytes
    if _cached_block_bytes is None:
        target = _DEFAULT_BLOCK_BYTES
        try:
            get_info = getattr(pltpu, "get_tpu_info", None)
            if get_info is not None:
                vmem = int(getattr(get_info(), "vmem_capacity_bytes", 0) or 0)
                # v7x-class parts report ~64 MiB VMEM per TC (v5e/v6e report 128 MiB).
                if 0 < vmem <= 80 * 1024 * 1024:
                    target = _V7X_BLOCK_BYTES
        except Exception:
            pass
        _cached_block_bytes = target
    return _cached_block_bytes


def _vmem_limit(block_bytes: int) -> int:
    # in + out, double-buffered, plus slack; clamped so it is legal on every
    # generation (v7x has only 64 MiB physical VMEM).
    return max(16 * 1024 * 1024,
               min(4 * block_bytes + 8 * 1024 * 1024, 48 * 1024 * 1024))


def _round_to_divisor(rows: int, target: int, mult: int) -> int:
    """Largest multiple of `mult` <= target that divides rows exactly."""
    target = max(mult, min(rows, target))
    target -= target % mult
    cand, tries = target, 0
    while cand >= mult and tries < 4096:
        if rows % cand == 0:
            return cand
        cand -= mult
        tries += 1
    return target


def _plan_2d_layout(n_elems: int, itemsize: int, block_bytes: int):
    """Pick a dtype-packed, sublane/lane-dense (rows, lanes, rows_per_block).

    Returns None if n_elems is not a multiple of 128 (caller uses the
    leading-dim-tiled fallback).
    """
    # Native packed tile height: 8 (f32), 16 (bf16/f16), 32 (int8/fp8).
    packed = max(_SUBLANE, (_SUBLANE * 4) // max(1, itemsize))
    row_mults = tuple(dict.fromkeys((packed, _SUBLANE, 1)))
    max_lanes = min(_MAX_LANES, n_elems)
    start = max_lanes - max_lanes % _LANE
    if start <= 0:
        return None
    for row_mult in row_mults:
        for lanes in range(start, 0, -_LANE):
            if n_elems % lanes:
                continue
            rows = n_elems // lanes
            if rows % row_mult:
                continue
            lane_bytes = lanes * itemsize
            target_rows = max(_SUBLANE, block_bytes // lane_bytes)
            # Guarantee >= _MIN_GRID_STEPS pipeline steps so read/write DMAs
            # overlap, but never shrink a step below _MIN_STEP_BYTES.
            min_step_rows = max(_SUBLANE, _MIN_STEP_BYTES // lane_bytes)
            cap = max(rows // _MIN_GRID_STEPS, min_step_rows)
            target_rows = min(target_rows, cap)
            if rows % _SUBLANE == 0:
                mult = row_mult if row_mult >= _SUBLANE else _SUBLANE
                rows_per_block = _round_to_divisor(rows, max(mult, target_rows), mult)
            else:
                # rows is not sublane-aligned: a legal block row-dim is either a
                # multiple of 8 (ragged last block is masked by Pallas) or the
                # full extent.
                if rows < _SUBLANE or target_rows >= rows:
                    rows_per_block = rows
                else:
                    rows_per_block = max(_SUBLANE,
                                         target_rows - target_rows % _SUBLANE)
            return rows, lanes, rows_per_block
    return None


@partial(jax.jit, static_argnames=("sizes",))
def unflatten(x: jax.Array, sizes) -> jax.Array:
    """Pallas equivalent of UnFlatten(sizes).forward(x): x.view(B, *sizes)."""
    sizes = tuple(int(s) for s in sizes)
    batch = x.shape[0]
    feat = math.prod(sizes)
    assert math.prod(x.shape[1:]) == feat, (x.shape, sizes)
    out_shape = (batch,) + sizes
    n_elems = batch * feat
    itemsize = x.dtype.itemsize
    block_bytes_target = _target_block_bytes()
    cost = pl.CostEstimate(flops=0, transcendentals=0,
                           bytes_accessed=2 * n_elems * itemsize)

    plan = _plan_2d_layout(n_elems, itemsize, block_bytes_target)

    if plan is None:
        # Element count not a multiple of 128: keep the last dim full-extent
        # (always a legal block dim) and tile the leading dim so large odd
        # shapes stay under the VMEM limit and still pipeline.
        x2d = x.reshape(batch, feat)
        if batch <= _SUBLANE:
            block_b = batch                                    # full extent
        else:
            bb = max(_SUBLANE, block_bytes_target // max(1, feat * itemsize))
            bb -= bb % _SUBLANE
            block_b = min(max(_SUBLANE, bb), (batch // _SUBLANE) * _SUBLANE)
        blk_bytes = block_b * feat * itemsize
        out2d = pl.pallas_call(
            _copy_kernel,
            out_shape=jax.ShapeDtypeStruct((batch, feat), x.dtype),
            grid=(pl.cdiv(batch, block_b),),
            in_specs=[pl.BlockSpec((block_b, feat), lambda i: (i, 0))],
            out_specs=pl.BlockSpec((block_b, feat), lambda i: (i, 0)),
            compiler_params=pltpu.CompilerParams(
                dimension_semantics=("parallel",),
                vmem_limit_bytes=_vmem_limit(blk_bytes),
            ),
            cost_estimate=cost,
        )(x2d)
        return out2d.reshape(out_shape)

    rows, lanes, block_rows = plan
    x2d = x.reshape(rows, lanes)            # metadata-only inside jit
    blk_bytes = block_rows * lanes * itemsize
    # NOTE: pipeline_mode=pl.Buffered(3) intentionally not set (default 2 kept).
    out2d = pl.pallas_call(
        _copy_kernel,
        out_shape=jax.ShapeDtypeStruct((rows, lanes), x.dtype),
        grid_spec=pltpu.PrefetchScalarGridSpec(
            num_scalar_prefetch=0,
            grid=(pl.cdiv(rows, block_rows),),
            in_specs=[pl.BlockSpec((block_rows, lanes), lambda i: (i, 0))],
            out_specs=pl.BlockSpec((block_rows, lanes), lambda i: (i, 0)),
        ),
        compiler_params=pltpu.CompilerParams(
            dimension_semantics=("parallel",),   # lets v7x shard blocks over 2 TCs
            vmem_limit_bytes=_vmem_limit(blk_bytes),
        ),
        cost_estimate=cost,
    )(x2d)
    return out2d.reshape(out_shape)


def _check(x, sizes):
    y = unflatten(x, sizes=tuple(sizes))
    jax.block_until_ready(y)
    y_ref = x.reshape((x.shape[0],) + tuple(sizes))  # torch .view semantics
    assert y.shape == y_ref.shape, (y.shape, y_ref.shape)
    assert y.dtype == x.dtype
    assert bool(jnp.array_equal(y, y_ref)), sizes


if __name__ == "__main__":
    key = jax.random.PRNGKey(0)
    k0, k1, k2, k3 = jax.random.split(key, 4)

    # Primary small case from the module spec: (2, 1024) -> (2, 4, 16, 16).
    x = jax.random.normal(k0, (2, 4 * 16 * 16), dtype=jnp.float32)
    _check(x, (4, 16, 16))

    # Multi-block tiled path (f32, 4 MiB): grid of 8 parallel 512 KiB blocks.
    x_big = jax.random.normal(k1, (2, 512 * 32 * 32), dtype=jnp.float32)
    _check(x_big, (512, 32, 32))

    # bf16 path: exercises dtype-aware (16,128) sublane packing.
    x_bf16 = jax.random.normal(k2, (2, 512 * 32 * 32), dtype=jnp.bfloat16)
    _check(x_bf16, (512, 32, 32))

    # Odd shape (element count not a multiple of 128): leading-dim-tiled fallback.
    x_odd = jax.random.normal(k3, (2, 3 * 5 * 7), dtype=jnp.float32)
    _check(x_odd, (3, 5, 7))

    print("KERNEL_OK")
</pallas_src>

<mosaic_0001>
module attributes {stable_mosaic.version = 11 : i64} {
  func.func @_copy_kernel(%arg0: i32, %arg1: memref<8x256xf32, #tpu.memory_space<vmem>>, %arg2: memref<8x256xf32, #tpu.memory_space<vmem>>) attributes {dimension_semantics = [#tpu.dimension_semantics<parallel>], iteration_bounds = array<i64: 1>, scalar_prefetch = 0 : i64, scratch_operands = 0 : i64, tpu.core_type = #tpu.core_type<tc>, window_params = [{transform_indices = @transform_0, window_bounds = array<i64: 8, 256>}, {transform_indices = @transform_1, window_bounds = array<i64: 8, 256>}]} {
    %c0 = arith.constant 0 : index
    %c0_0 = arith.constant 0 : index
    %0 = vector.load %arg1[%c0, %c0_0] : memref<8x256xf32, #tpu.memory_space<vmem>>, vector<8x256xf32>
    %c0_1 = arith.constant 0 : index
    %c0_2 = arith.constant 0 : index
    %1 = vector.load %arg2[%c0_1, %c0_2] : memref<8x256xf32, #tpu.memory_space<vmem>>, vector<8x256xf32>
    tpu.vector_store %arg2[%c0_1, %c0_2], %0 {strides = array<i32>} : memref<8x256xf32, #tpu.memory_space<vmem>>, vector<8x256xf32>,
    return
  }
  func.func @transform_0(%arg0: i32) -> (i32, i32) {
    %c0_i32 = arith.constant 0 : i32
    %c0_i32_0 = arith.constant 0 : i32
    return %arg0, %c0_i32 : i32, i32
  }
  func.func @transform_1(%arg0: i32) -> (i32, i32) {
    %c0_i32 = arith.constant 0 : i32
    %c0_i32_0 = arith.constant 0 : i32
    return %arg0, %c0_i32 : i32, i32
  }
}

</mosaic_0001>

<llo_original>
// kernel: unflatten.1
$region0: #{unflatten.1}
  #allocation0 [shape = 'u32[]', space=smem, size = 0x4, offset = 0x4, fixed_abs, tag = 'smem constant byte address 0x4 - core index']
  #allocation1 [shape = 'u32[144,128]{1,0:T(1,128)}', space=vmem, size = 0x12000, scoped, tag = 'internal scratch']
  %s0 = inlined_call_operand.vmem [shape: f32[8,256], index: 0, kind: input, shape index: {}]
  %s1 = inlined_call_operand.vmem [shape: f32[8,256], index: 1, kind: output, shape index: {}]
  %s2 = sld [smem:[#allocation0]]
  $region14: #{unflatten.1} parent=0
    _
  %s4 = ssub.s32 1, %s2
  %s5 = scalar_select 0, %s4, %s2
  // Predicated region
  $region2: #{unflatten.1} parent=0 // pred_check
    _
  $region3: #{unflatten.1} parent=0 // pred_check_branch
    %7 = sbr.rel (0) target = $region5
  $region4: #{unflatten.1} parent=0 // pred_region
    _
  $region5: #{unflatten.1} parent=0 // pred_fallthru
    _
  %v8 = vld [vmem:[%s0] sm:$0xff]
  %v9 = vld [vmem:[%s0 + $0x8] sm:$0xff]
  %10 = vst [vmem:[%s1] sm:$0xff] %v8
  %11 = vst [vmem:[%s1 + $0x8] sm:$0xff] %v9
  // Predicated region
  $region6: #{unflatten.1} parent=0 // pred_check
    _
  $region7: #{unflatten.1} parent=0 // pred_check_branch
    %13 = sbr.rel (0) target = $region9
  $region8: #{unflatten.1} parent=0 // pred_region
    _
  $region9: #{unflatten.1} parent=0 // pred_fallthru
    _
  // Predicated region
  $region10: #{unflatten.1} parent=0 // pred_check
    _
  $region11: #{unflatten.1} parent=0 // pred_check_branch
    %15 = sbr.rel (0) target = $region13
  $region12: #{unflatten.1} parent=0 // pred_region
    _
  $region13: #{unflatten.1} parent=0 // pred_fallthru
    _

</llo_original>
